<compile_context>
chip_gen: v7x
topology: tpu7x:2x2x1
jax: 0.10.0
libtpu: 0.0.40
codegen_flags: <defaults>
</compile_context>

<pallas_src>
import jax
import jax.numpy as jnp
from jax.experimental import pallas as pl
from jax.experimental.pallas import tpu as pltpu


def _film_kernel(ss_ref, x_ref, o_ref):
    # ss_ref: (TR, 2) f32 — column 0 = (1 + scale), column 1 = shift, per row.
    # x_ref / o_ref: (TR, TL) in x.dtype — lane-dense tile of flattened (B*C, L).
    s = ss_ref[:, 0:1]                       # (TR, 1), broadcasts over lanes
    t = ss_ref[:, 1:2]                       # (TR, 1)
    x = x_ref[...].astype(jnp.float32)       # f32 FMA; free (HBM-bound kernel)
    o_ref[...] = (x * s + t).astype(o_ref.dtype)


def film(x, cond, weight, bias):
    """FiLM forward.  x: (B, C, L), cond: (B, cond_dim), weight: (2C, cond_dim), bias: (2C,)."""
    B, C, L = x.shape
    R = B * C
    itemsize = jnp.dtype(x.dtype).itemsize

    # ---- Hoisted Linear: one tiny (B, 2C) GEMM in plain JAX (f32) -----------
    ss = jnp.dot(cond.astype(jnp.float32), weight.astype(jnp.float32).T)
    ss = ss + bias.astype(jnp.float32)                     # (B, 2C)
    scale_p1 = 1.0 + ss[:, :C]                             # (B, C) = 1 + scale
    shift = ss[:, C:]                                      # (B, C)
    # Pack per-row (1+scale, shift) into one (B*C, 2) array -> single tiny DMA.
    ss_pack = jnp.stack([scale_p1, shift], axis=-1).reshape(R, 2)

    # ---- Flatten to (B*C, L): fills sublanes independent of C ---------------
    x2 = x.reshape(R, L)

    # ---- Tile by bytes, not fixed lane counts --------------------------------
    LANE = 128
    SUB = max(8, 32 // itemsize)       # sublane multiple: 8 f32, 16 bf16, 32 i8
    MAX_BLOCK = 4 << 20                # per-block cap (keeps 4x blocks << v7x VMEM)
    TARGET = 2 << 20                   # ~2 MiB blocks: 85%+ of HBM roofline

    if SUB * L * itemsize <= MAX_BLOCK:
        TL = L                         # whole row in one block: legal for any L
    else:
        TL = max(LANE, (MAX_BLOCK // (SUB * itemsize)) // LANE * LANE)

    TR = max(SUB, (TARGET // (TL * itemsize)) // SUB * SUB)
    if TR >= R:
        TR = R                         # single row-block: full-dim is always legal
    # Give both TensorCores work when the grid would otherwise be one tile.
    if pl.cdiv(R, TR) == 1 and pl.cdiv(L, TL) == 1 and R >= 2 * SUB:
        TR = ((pl.cdiv(R, 2) + SUB - 1) // SUB) * SUB

    grid = (pl.cdiv(R, TR), pl.cdiv(L, TL))

    # Explicit scoped-VMEM budget (v5e default is only 16 MiB; v7x physical 64 MiB).
    block_bytes = TR * TL * itemsize
    needed = 4 * block_bytes + 4 * TR * 2 * 4 + (1 << 20)
    vmem_limit = int(min(48 << 20, max(needed, 32 << 20)))

    out = pl.pallas_call(
        _film_kernel,
        out_shape=jax.ShapeDtypeStruct((R, L), x.dtype),
        grid_spec=pltpu.PrefetchScalarGridSpec(
            num_scalar_prefetch=0,
            grid=grid,
            in_specs=[
                # per-row (1+scale, shift): tiny, revisited across L-tiles
                pl.BlockSpec((TR, 2), lambda r, l: (r, 0)),
                # lane-dense (TR, TL) tile of x (ragged tails masked by Pallas)
                pl.BlockSpec((TR, TL), lambda r, l: (r, l)),
            ],
            out_specs=pl.BlockSpec((TR, TL), lambda r, l: (r, l)),
        ),
        compiler_params=pltpu.CompilerParams(
            dimension_semantics=("parallel", "parallel"),
            vmem_limit_bytes=vmem_limit),
        cost_estimate=pl.CostEstimate(
            flops=2 * B * C * L,
            bytes_accessed=2 * B * C * L * itemsize + R * 2 * 4,
            transcendentals=0),
    )(ss_pack, x2)

    return out.reshape(B, C, L)


def film_reference(x, cond, weight, bias):
    ss = cond @ weight.T + bias                            # (B, 2C)
    C = x.shape[1]
    scale, shift = ss[:, :C], ss[:, C:]
    return x * (1.0 + scale)[:, :, None] + shift[:, :, None]


if __name__ == "__main__":
    B, C, L, cond_dim = 2, 4, 16, 8

    key = jax.random.PRNGKey(0)
    kx, kc, kw, kb = jax.random.split(key, 4)

    x = jax.random.normal(kx, (B, C, L), dtype=jnp.float32)
    cond = jax.random.normal(kc, (B, cond_dim), dtype=jnp.float32)

    # nn.Linear(cond_dim, 2*C) deterministic init: U(-1/sqrt(cond_dim), +1/sqrt(cond_dim))
    bound = 1.0 / (cond_dim ** 0.5)
    weight = jax.random.uniform(kw, (2 * C, cond_dim), jnp.float32, -bound, bound)
    bias = jax.random.uniform(kb, (2 * C,), jnp.float32, -bound, bound)

    out = jax.block_until_ready(film(x, cond, weight, bias))

    ref = film_reference(x, cond, weight, bias)
    assert out.shape == (B, C, L)
    assert jnp.allclose(out, ref, atol=1e-5, rtol=1e-5)

    print("KERNEL_OK")
</pallas_src>

<mosaic_0001>
module attributes {stable_mosaic.version = 11 : i64} {
  func.func @_film_kernel(%arg0: i32, %arg1: i32, %arg2: memref<8x2xf32, #tpu.memory_space<vmem>>, %arg3: memref<8x16xf32, #tpu.memory_space<vmem>>, %arg4: memref<8x16xf32, #tpu.memory_space<vmem>>) attributes {dimension_semantics = [#tpu.dimension_semantics<parallel>, #tpu.dimension_semantics<parallel>], iteration_bounds = array<i64: 1, 1>, scalar_prefetch = 0 : i64, scratch_operands = 0 : i64, tpu.core_type = #tpu.core_type<tc>, window_params = [{transform_indices = @transform_0, window_bounds = array<i64: 8, 2>}, {transform_indices = @transform_1, window_bounds = array<i64: 8, 16>}, {transform_indices = @transform_2, window_bounds = array<i64: 8, 16>}]} {
    %c0 = arith.constant 0 : index
    %c0_0 = arith.constant 0 : index
    %0 = vector.load %arg2[%c0, %c0_0] : memref<8x2xf32, #tpu.memory_space<vmem>>, vector<8x1xf32>
    %c0_1 = arith.constant 0 : index
    %c1 = arith.constant 1 : index
    %1 = vector.load %arg2[%c0_1, %c1] : memref<8x2xf32, #tpu.memory_space<vmem>>, vector<8x1xf32>
    %c0_2 = arith.constant 0 : index
    %c0_3 = arith.constant 0 : index
    %2 = vector.load %arg3[%c0_2, %c0_3] : memref<8x16xf32, #tpu.memory_space<vmem>>, vector<8x16xf32>
    %3 = vector.broadcast %0 : vector<8x1xf32> to vector<8x16xf32>
    %4 = arith.mulf %2, %3 : vector<8x16xf32>
    %5 = vector.broadcast %1 : vector<8x1xf32> to vector<8x16xf32>
    %6 = arith.addf %4, %5 : vector<8x16xf32>
    %c0_4 = arith.constant 0 : index
    %c0_5 = arith.constant 0 : index
    %7 = vector.load %arg4[%c0_4, %c0_5] : memref<8x16xf32, #tpu.memory_space<vmem>>, vector<8x16xf32>
    tpu.vector_store %arg4[%c0_4, %c0_5], %6 {strides = array<i32>} : memref<8x16xf32, #tpu.memory_space<vmem>>, vector<8x16xf32>,
    return
  }
  func.func @transform_0(%arg0: i32, %arg1: i32) -> (i32, i32) {
    %c0_i32 = arith.constant 0 : i32
    %c0_i32_0 = arith.constant 0 : i32
    return %arg0, %c0_i32 : i32, i32
  }
  func.func @transform_1(%arg0: i32, %arg1: i32) -> (i32, i32) {
    %c0_i32 = arith.constant 0 : i32
    return %arg0, %arg1 : i32, i32
  }
  func.func @transform_2(%arg0: i32, %arg1: i32) -> (i32, i32) {
    %c0_i32 = arith.constant 0 : i32
    return %arg0, %arg1 : i32, i32
  }
}

</mosaic_0001>

<llo_original>
// kernel: tpu_custom_call.1
$region0: #{tpu_custom_call.1}
  #allocation0 [shape = 'u32[]', space=smem, size = 0x4, offset = 0x4, fixed_abs, tag = 'smem constant byte address 0x4 - core index']
  #allocation1 [shape = 'u32[144,128]{1,0:T(1,128)}', space=vmem, size = 0x12000, scoped, tag = 'internal scratch']
  %s0 = inlined_call_operand.vmem [shape: f32[8,2], index: 0, kind: input, shape index: {}]
  %s1 = inlined_call_operand.vmem [shape: f32[8,16], index: 1, kind: input, shape index: {}]
  %s2 = inlined_call_operand.hbm [shape: f32[8,16], index: 2, kind: output, shape index: {}]
  %s3 = sld [smem:[#allocation0]]
  $region18: #{tpu_custom_call.1} parent=0
    _
  %s5 = ssub.s32 1, %s3
  %s6 = scalar_select 0, %s5, %s3
  $region1: #{tpu_custom_call.1} parent=0
    #allocation2 [shape = 'u8[4096]{0}', space=vmem, size = 0x1000, scoped, tag = 'output window, operand 0, single buffered']
    #allocation3 [shape = 's32[1]{0}', space=sflag, size = 0x4, scoped, tag = 'scoped memory for tpu_custom_call.1']
    %7 = vsyncpa [#allocation3], 0
    // Predicated region
    $region2: #{tpu_custom_call.1} parent=1 // pred_check
      _
    $region3: #{tpu_custom_call.1} parent=1 // pred_check_branch
      %9 = sbr.rel (0) target = $region5
    $region4: #{tpu_custom_call.1} parent=1 // pred_region
      _
    $region5: #{tpu_custom_call.1} parent=1 // pred_fallthru
      _
    // Predicated region
    $region6: #{tpu_custom_call.1} parent=1 // pred_check
      _
    $region7: #{tpu_custom_call.1} parent=1 // pred_check_branch
      %11 = sbr.rel (0) target = $region9
    $region8: #{tpu_custom_call.1} parent=1 // pred_region
      _
    $region9: #{tpu_custom_call.1} parent=1 // pred_fallthru
      _
    %v12 = vld [vmem:[%s0] sm:$0xff]
    %v13 = vld [vmem:[%s1] sm:$0xff]
    %15 = vset.pattern.permute.xlu0 0
    %16 = vperm.xlu0 %15, %v12
    %v17 = vpop.permute.xlu0 %16
    %v19 = vmul.f32 %v13, %v17
    %20 = vset.pattern.permute.xlu0 1
    %21 = vperm.xlu0 %20, %v12
    %v22 = vpop.permute.xlu0 %21
    %v24 = vadd.f32 %v19, %v22
    %vm25 = vcmask 130048
    %26 = vst.msk [vmem:[#allocation2] sm:$0xff] %vm25, %v24
    // Predicated region
    $region10: #{tpu_custom_call.1} parent=1 // pred_check
      _
    $region11: #{tpu_custom_call.1} parent=1 // pred_check_branch
      %28 = sbr.rel (0) target = $region13
    $region12: #{tpu_custom_call.1} parent=1 // pred_region
      %s30 = ssub.s32 128, 128
      %31 = vsyncadd [#allocation3], %s30
      %s33 = sshll.u32 [#allocation2], 4
      %s34 = int_to_ptr.vmem [resolvable:$true] %s33
      %36 = dma.vmem_to_hbm [thread:$0]  %s34, 128, %s2, [#allocation3]
    $region13: #{tpu_custom_call.1} parent=1 // pred_fallthru
      _
    // Predicated region
    $region14: #{tpu_custom_call.1} parent=1 // pred_check
      _
    $region15: #{tpu_custom_call.1} parent=1 // pred_check_branch
      %38 = sbr.rel (0) target = $region17
    $region16: #{tpu_custom_call.1} parent=1 // pred_region
      %39 = dma.done [#allocation3], 128
    $region17: #{tpu_custom_call.1} parent=1 // pred_fallthru
      _
    %40 = vsyncpa [#allocation3], 1

</llo_original>
